<compile_context>
chip_gen: v6e
topology: v6e:2x2x1
jax: 0.10.0
libtpu: 0.0.40
codegen_flags: <defaults>
</compile_context>

<pallas_src>
import jax
import jax.numpy as jnp
import numpy as np
from jax.experimental import pallas as pl
from jax.experimental.pallas import tpu as pltpu


def picker_kernel(alpha_ref, h_ref, w1_ref, b1_ref, w2_ref, b2_ref, out_ref):
    # nn.Dropout(p=0.2): identity in eval mode (inference forward).
    h = h_ref[...]

    # l1: (TB, D) @ (D, R) + (1, R)   -- one MXU push
    z = jnp.dot(h, w1_ref[...], preferred_element_type=jnp.float32) + b1_ref[...]

    # PReLU (single shared slope, PyTorch default num_parameters=1):
    #   f(x) = max(0, x) + a * min(0, x)
    z = jnp.maximum(z, 0.0) + alpha_ref[...] * jnp.minimum(z, 0.0)

    # l2: (TB, R) @ (R, O) + (1, O)   -- one MXU push
    s = jnp.dot(z, w2_ref[...], preferred_element_type=jnp.float32) + b2_ref[...]

    # Softmax over dim=1 (last axis), numerically stable.
    m = jnp.max(s, axis=-1, keepdims=True)
    e = jnp.exp(s - m)
    out_ref[...] = e / jnp.sum(e, axis=-1, keepdims=True)


def picker_forward(hidden, params):
    """hidden: (B, 2*hidden_size) float32. Returns softmax scores (B, output_size)."""
    B, D = hidden.shape
    R = params["w1"].shape[1]
    O = params["w2"].shape[1]

    # Batch tile: whole batch for small B, 128-row tiles otherwise.
    TB = B if B <= 128 else 128
    grid = (pl.cdiv(B, TB),)

    return pl.pallas_call(
        picker_kernel,
        out_shape=jax.ShapeDtypeStruct((B, O), jnp.float32),
        grid_spec=pltpu.PrefetchScalarGridSpec(
            num_scalar_prefetch=0,
            grid=grid,
            in_specs=[
                pl.BlockSpec((1, 1), lambda i: (0, 0)),     # PReLU slope
                pl.BlockSpec((TB, D), lambda i: (i, 0)),    # hidden (batch tiled)
                pl.BlockSpec((D, R), lambda i: (0, 0)),     # W1 (in, out)
                pl.BlockSpec((1, R), lambda i: (0, 0)),     # b1
                pl.BlockSpec((R, O), lambda i: (0, 0)),     # W2 (in, out)
                pl.BlockSpec((1, O), lambda i: (0, 0)),     # b2
            ],
            out_specs=pl.BlockSpec((TB, O), lambda i: (i, 0)),
        ),
        compiler_params=pltpu.CompilerParams(
            dimension_semantics=("parallel",)),   # batch tiles are independent
    )(params["alpha"], hidden,
      params["w1"], params["b1"], params["w2"], params["b2"])


def ref_picker(hidden, params):
    """Pure-JAX reference with identical (eval-mode) semantics."""
    z = hidden @ params["w1"] + params["b1"]
    z = jnp.maximum(z, 0.0) + params["alpha"] * jnp.minimum(z, 0.0)
    s = z @ params["w2"] + params["b2"]
    return jax.nn.softmax(s, axis=1)


if __name__ == "__main__":
    # Picker(batch_sz, hidden_size, relu_size, output_size)
    batch_sz, hidden_size, relu_size, output_size = 2, 32, 64, 16
    D = hidden_size * 2   # forward input is (B, hidden_size * 2)

    key = jax.random.PRNGKey(0)
    ks = jax.random.split(key, 5)
    params = {
        # Linear weights stored transposed (in, out) for x @ W on the MXU.
        "w1": jax.random.normal(ks[0], (D, relu_size), jnp.float32) / np.sqrt(D),
        "b1": jax.random.normal(ks[1], (1, relu_size), jnp.float32) * 0.1,
        "w2": jax.random.normal(ks[2], (relu_size, output_size), jnp.float32) / np.sqrt(relu_size),
        "b2": jax.random.normal(ks[3], (1, output_size), jnp.float32) * 0.1,
        # PReLU default init (num_parameters=1, a=0.25).
        "alpha": jnp.full((1, 1), 0.25, jnp.float32),
    }
    hidden = jax.random.normal(ks[4], (batch_sz, D), jnp.float32)

    score = picker_forward(hidden, params)
    jax.block_until_ready(score)

    ref = ref_picker(hidden, params)
    np.testing.assert_allclose(np.asarray(score), np.asarray(ref), rtol=1e-5, atol=1e-5)
    # sanity: softmax rows sum to 1
    np.testing.assert_allclose(np.asarray(score).sum(axis=1), np.ones(batch_sz), rtol=1e-5, atol=1e-5)

    print("KERNEL_OK")
</pallas_src>

<mosaic_0001>
module attributes {stable_mosaic.version = 11 : i64} {
  func.func @picker_kernel(%arg0: i32, %arg1: memref<1x1xf32, #tpu.memory_space<vmem>>, %arg2: memref<2x64xf32, #tpu.memory_space<vmem>>, %arg3: memref<64x64xf32, #tpu.memory_space<vmem>>, %arg4: memref<1x64xf32, #tpu.memory_space<vmem>>, %arg5: memref<64x16xf32, #tpu.memory_space<vmem>>, %arg6: memref<1x16xf32, #tpu.memory_space<vmem>>, %arg7: memref<2x16xf32, #tpu.memory_space<vmem>>) attributes {dimension_semantics = [#tpu.dimension_semantics<parallel>], iteration_bounds = array<i64: 1>, scalar_prefetch = 0 : i64, scratch_operands = 0 : i64, tpu.core_type = #tpu.core_type<tc>, window_params = [{pipeline_mode = #tpu.pipeline_mode<synchronous>, transform_indices = @transform_0, window_bounds = array<i64: 1, 1>}, {transform_indices = @transform_1, window_bounds = array<i64: 2, 64>}, {pipeline_mode = #tpu.pipeline_mode<synchronous>, transform_indices = @transform_2, window_bounds = array<i64: 64, 64>}, {pipeline_mode = #tpu.pipeline_mode<synchronous>, transform_indices = @transform_3, window_bounds = array<i64: 1, 64>}, {pipeline_mode = #tpu.pipeline_mode<synchronous>, transform_indices = @transform_4, window_bounds = array<i64: 64, 16>}, {pipeline_mode = #tpu.pipeline_mode<synchronous>, transform_indices = @transform_5, window_bounds = array<i64: 1, 16>}, {transform_indices = @transform_6, window_bounds = array<i64: 2, 16>}]} {
    %c0 = arith.constant 0 : index
    %c0_0 = arith.constant 0 : index
    %0 = vector.load %arg2[%c0, %c0_0] : memref<2x64xf32, #tpu.memory_space<vmem>>, vector<2x64xf32>
    %c0_1 = arith.constant 0 : index
    %c0_2 = arith.constant 0 : index
    %1 = vector.load %arg3[%c0_1, %c0_2] : memref<64x64xf32, #tpu.memory_space<vmem>>, vector<64x64xf32>
    %cst = arith.constant dense<0.000000e+00> : vector<2x64xf32>
    %2 = tpu.matmul %0, %1, %cst {dimension_numbers = #tpu.dot_dimension_numbers<[1], [0], [0], [1], [0, 0, 1, 1], [], []>} : vector<2x64xf32>, vector<64x64xf32>, vector<2x64xf32> -> vector<2x64xf32>
    %c0_3 = arith.constant 0 : index
    %c0_4 = arith.constant 0 : index
    %3 = vector.load %arg4[%c0_3, %c0_4] : memref<1x64xf32, #tpu.memory_space<vmem>>, vector<1x64xf32>
    %4 = vector.broadcast %3 : vector<1x64xf32> to vector<2x64xf32>
    %5 = arith.addf %2, %4 : vector<2x64xf32>
    %cst_5 = arith.constant 0.000000e+00 : f32
    %6 = vector.broadcast %cst_5 : f32 to vector<2x64xf32>
    %7 = arith.maximumf %5, %6 : vector<2x64xf32>
    %c0_6 = arith.constant 0 : index
    %c0_7 = arith.constant 0 : index
    %8 = vector.load %arg1[%c0_6, %c0_7] : memref<1x1xf32, #tpu.memory_space<vmem>>, vector<1x1xf32>
    %cst_8 = arith.constant 0.000000e+00 : f32
    %9 = vector.broadcast %cst_8 : f32 to vector<2x64xf32>
    %10 = arith.minimumf %5, %9 : vector<2x64xf32>
    %11 = vector.broadcast %8 : vector<1x1xf32> to vector<2x64xf32>
    %12 = arith.mulf %11, %10 : vector<2x64xf32>
    %13 = arith.addf %7, %12 : vector<2x64xf32>
    %c0_9 = arith.constant 0 : index
    %c0_10 = arith.constant 0 : index
    %14 = vector.load %arg5[%c0_9, %c0_10] : memref<64x16xf32, #tpu.memory_space<vmem>>, vector<64x16xf32>
    %cst_11 = arith.constant dense<0.000000e+00> : vector<2x16xf32>
    %15 = tpu.matmul %13, %14, %cst_11 {dimension_numbers = #tpu.dot_dimension_numbers<[1], [0], [0], [1], [0, 0, 1, 1], [], []>} : vector<2x64xf32>, vector<64x16xf32>, vector<2x16xf32> -> vector<2x16xf32>
    %c0_12 = arith.constant 0 : index
    %c0_13 = arith.constant 0 : index
    %16 = vector.load %arg6[%c0_12, %c0_13] : memref<1x16xf32, #tpu.memory_space<vmem>>, vector<1x16xf32>
    %17 = vector.broadcast %16 : vector<1x16xf32> to vector<2x16xf32>
    %18 = arith.addf %15, %17 : vector<2x16xf32>
    %cst_14 = arith.constant dense<0xFF800000> : vector<2xf32>
    %19 = vector.multi_reduction <maximumf>, %18, %cst_14 [1] : vector<2x16xf32> to vector<2xf32>
    %20 = vector.shape_cast %19 : vector<2xf32> to vector<2x1xf32>
    %21 = vector.broadcast %20 : vector<2x1xf32> to vector<2x16xf32>
    %22 = arith.subf %18, %21 : vector<2x16xf32>
    %23 = math.exp %22 : vector<2x16xf32>
    %cst_15 = arith.constant dense<0.000000e+00> : vector<2xf32>
    %24 = vector.multi_reduction <add>, %23, %cst_15 [1] : vector<2x16xf32> to vector<2xf32>
    %25 = vector.shape_cast %24 : vector<2xf32> to vector<2x1xf32>
    %26 = vector.broadcast %25 : vector<2x1xf32> to vector<2x16xf32>
    %27 = arith.divf %23, %26 : vector<2x16xf32>
    %c0_16 = arith.constant 0 : index
    %c0_17 = arith.constant 0 : index
    %28 = vector.load %arg7[%c0_16, %c0_17] : memref<2x16xf32, #tpu.memory_space<vmem>>, vector<2x16xf32>
    tpu.vector_store %arg7[%c0_16, %c0_17], %27 {strides = array<i32>} : memref<2x16xf32, #tpu.memory_space<vmem>>, vector<2x16xf32>,
    return
  }
  func.func @transform_0(%arg0: i32) -> (i32, i32) {
    %c0_i32 = arith.constant 0 : i32
    %c0_i32_0 = arith.constant 0 : i32
    %c0_i32_1 = arith.constant 0 : i32
    return %c0_i32, %c0_i32_0 : i32, i32
  }
  func.func @transform_1(%arg0: i32) -> (i32, i32) {
    %c0_i32 = arith.constant 0 : i32
    %c0_i32_0 = arith.constant 0 : i32
    return %arg0, %c0_i32 : i32, i32
  }
  func.func @transform_2(%arg0: i32) -> (i32, i32) {
    %c0_i32 = arith.constant 0 : i32
    %c0_i32_0 = arith.constant 0 : i32
    %c0_i32_1 = arith.constant 0 : i32
    return %c0_i32, %c0_i32_0 : i32, i32
  }
  func.func @transform_3(%arg0: i32) -> (i32, i32) {
    %c0_i32 = arith.constant 0 : i32
    %c0_i32_0 = arith.constant 0 : i32
    %c0_i32_1 = arith.constant 0 : i32
    return %c0_i32, %c0_i32_0 : i32, i32
  }
  func.func @transform_4(%arg0: i32) -> (i32, i32) {
    %c0_i32 = arith.constant 0 : i32
    %c0_i32_0 = arith.constant 0 : i32
    %c0_i32_1 = arith.constant 0 : i32
    return %c0_i32, %c0_i32_0 : i32, i32
  }
  func.func @transform_5(%arg0: i32) -> (i32, i32) {
    %c0_i32 = arith.constant 0 : i32
    %c0_i32_0 = arith.constant 0 : i32
    %c0_i32_1 = arith.constant 0 : i32
    return %c0_i32, %c0_i32_0 : i32, i32
  }
  func.func @transform_6(%arg0: i32) -> (i32, i32) {
    %c0_i32 = arith.constant 0 : i32
    %c0_i32_0 = arith.constant 0 : i32
    return %arg0, %c0_i32 : i32, i32
  }
}

</mosaic_0001>

<llo_original>
// kernel: tpu_custom_call.1
$region0: #{tpu_custom_call.1}
  #allocation0 [shape = 'u32[]', space=smem, size = 0x4, offset = 0x4, fixed_abs, tag = 'smem constant byte address 0x4 - core index']
  #allocation1 [shape = 'u32[144,128]{1,0:T(1,128)}', space=vmem, size = 0x12000, scoped, tag = 'internal scratch']
  #allocation2 [shape = 'f32[1,1]{1,0:T(1,128)S(1)}', space=vmem, size = 0x200, scoped, tag = 'scoped memory for tpu_custom_call.1']
  %s0 = inlined_call_operand.<no memory space> [shape: f32[1,1], index: 0, kind: input, shape index: {}]
  %s1 = inlined_call_operand.vmem [shape: f32[2,64], index: 1, kind: input, shape index: {}]
  %s2 = inlined_call_operand.vmem [shape: f32[64,64], index: 2, kind: input, shape index: {}]
  %s3 = inlined_call_operand.vmem [shape: f32[1,64], index: 3, kind: input, shape index: {}]
  %s4 = inlined_call_operand.vmem [shape: f32[64,16], index: 4, kind: input, shape index: {}]
  %s5 = inlined_call_operand.vmem [shape: f32[1,16], index: 5, kind: input, shape index: {}]
  %s6 = inlined_call_operand.hbm [shape: f32[2,16], index: 6, kind: output, shape index: {}]
  %s7 = sld [smem:[#allocation0]]
  $region34: #{tpu_custom_call.1} parent=0
    _
  %s9 = ssub.s32 1, %s7
  %s10 = scalar_select 0, %s9, %s7
  %v11 = vstv %s0
  %12 = vst [vmem:[#allocation2] sm:$0x1] %v11
  $region1: #{tpu_custom_call.1} parent=0
    #allocation3 [shape = 'u8[1024]{0}', space=vmem, size = 0x400, scoped, tag = 'output window, operand 0, single buffered']
    #allocation4 [shape = 's32[1]{0}', space=sflag, size = 0x4, scoped, tag = 'scoped memory for tpu_custom_call.1']
    %13 = vsyncpa [#allocation4], 0
    // Predicated region
    $region2: #{tpu_custom_call.1} parent=1 // pred_check
      _
    $region3: #{tpu_custom_call.1} parent=1 // pred_check_branch
      %15 = sbr.rel (0) target = $region5
    $region4: #{tpu_custom_call.1} parent=1 // pred_region
      _
    $region5: #{tpu_custom_call.1} parent=1 // pred_fallthru
      _
    // Predicated region
    $region6: #{tpu_custom_call.1} parent=1 // pred_check
      _
    $region7: #{tpu_custom_call.1} parent=1 // pred_check_branch
      %17 = sbr.rel (0) target = $region9
    $region8: #{tpu_custom_call.1} parent=1 // pred_region
      _
    $region9: #{tpu_custom_call.1} parent=1 // pred_fallthru
      _
    // Predicated region
    $region10: #{tpu_custom_call.1} parent=1 // pred_check
      _
    $region11: #{tpu_custom_call.1} parent=1 // pred_check_branch
      %19 = sbr.rel (0) target = $region13
    $region12: #{tpu_custom_call.1} parent=1 // pred_region
      _
    $region13: #{tpu_custom_call.1} parent=1 // pred_fallthru
      _
    // Predicated region
    $region14: #{tpu_custom_call.1} parent=1 // pred_check
      _
    $region15: #{tpu_custom_call.1} parent=1 // pred_check_branch
      %21 = sbr.rel (0) target = $region17
    $region16: #{tpu_custom_call.1} parent=1 // pred_region
      _
    $region17: #{tpu_custom_call.1} parent=1 // pred_fallthru
      _
    // Predicated region
    $region18: #{tpu_custom_call.1} parent=1 // pred_check
      _
    $region19: #{tpu_custom_call.1} parent=1 // pred_check_branch
      %23 = sbr.rel (0) target = $region21
    $region20: #{tpu_custom_call.1} parent=1 // pred_region
      _
    $region21: #{tpu_custom_call.1} parent=1 // pred_fallthru
      _
    // Predicated region
    $region22: #{tpu_custom_call.1} parent=1 // pred_check
      _
    $region23: #{tpu_custom_call.1} parent=1 // pred_check_branch
      %25 = sbr.rel (0) target = $region25
    $region24: #{tpu_custom_call.1} parent=1 // pred_region
      _
    $region25: #{tpu_custom_call.1} parent=1 // pred_fallthru
      _
    %v26 = vld [vmem:[%s1] sm:$0x3]
    %v27 = vld [vmem:[%s2] sm:$0xff]
    %v28 = vld [vmem:[%s2 + $0x8] sm:$0xff]
    %v29 = vld [vmem:[%s2 + $0x10] sm:$0xff]
    %v30 = vld [vmem:[%s2 + $0x18] sm:$0xff]
    %v31 = vld [vmem:[%s2 + $0x20] sm:$0xff]
    %v32 = vld [vmem:[%s2 + $0x28] sm:$0xff]
    %v33 = vld [vmem:[%s2 + $0x30] sm:$0xff]
    %v34 = vld [vmem:[%s2 + $0x38] sm:$0xff]
    %v35 = vld [vmem:[%s3] sm:$0x1]
    %v37 = vlaneseq
    %v38 = vshrl.u32 %v37, 7
    %v39 = vsub.s32 0, %v38
    %v40 = vrot.slane %v35, %v39
    %vm42 = vcmask 523264
    %v44 = vsel %vm42, %v26, 0
    %46 = vmatprep.subr.mxu0 0.0
    %47 = vmatpush1.msra.mxu0 0.0
    %48 = vmatprep.subr.mxu0 0.0
    %49 = vmatpush1.msra.mxu0 0.0
    %50 = vmatprep.subr.mxu0 0.0
    %51 = vmatpush1.msra.mxu0 0.0
    %52 = vmatprep.subr.mxu0 0.0
    %53 = vmatpush1.msra.mxu0 0.0
    %54 = vmatprep.subr.mxu0 0.0
    %55 = vmatpush1.msra.mxu0 0.0
    %56 = vmatprep.subr.mxu0 0.0
    %57 = vmatpush1.msra.mxu0 0.0
    %58 = vmatprep.subr.mxu0 0.0
    %59 = vmatpush1.msra.mxu0 0.0
    %60 = vmatprep.subr.mxu0 0.0
    %61 = vmatpush1.msra.mxu0 0.0
    %62 = vmatprep.subr.mxu0 0.0
    %63 = vmatpush1.msra.mxu0 %v34
    %64 = vmatprep.subr.mxu0 0.0
    %65 = vmatpush1.msra.mxu0 %v33
    %66 = vmatprep.subr.mxu0 0.0
    %67 = vmatpush1.msra.mxu0 %v32
    %68 = vmatprep.subr.mxu0 0.0
    %69 = vmatpush1.msra.mxu0 %v31
    %70 = vmatprep.subr.mxu0 0.0
    %71 = vmatpush1.msra.mxu0 %v30
    %72 = vmatprep.subr.mxu0 0.0
    %73 = vmatpush1.msra.mxu0 %v29
    %74 = vmatprep.subr.mxu0 0.0
    %75 = vmatpush1.msra.mxu0 %v28
    %76 = vmatprep.subr.mxu0 0.0
    %77 = vmatpush1.msra.mxu0 %v27
    %78 = vmatprep.subr.mxu0 0.0
    %79 = vmatpush2.msra.mxu0 0.0
    %80 = vmatprep.subr.mxu0 0.0
    %81 = vmatpush2.msra.mxu0 0.0
    %82 = vmatprep.subr.mxu0 0.0
    %83 = vmatpush2.msra.mxu0 0.0
    %84 = vmatprep.subr.mxu0 0.0
    %85 = vmatpush2.msra.mxu0 0.0
    %86 = vmatprep.subr.mxu0 0.0
    %87 = vmatpush2.msra.mxu0 0.0
    %88 = vmatprep.subr.mxu0 0.0
    %89 = vmatpush2.msra.mxu0 0.0
    %90 = vmatprep.subr.mxu0 0.0
    %91 = vmatpush2.msra.mxu0 0.0
    %92 = vmatprep.subr.mxu0 0.0
    %93 = vmatpush2.msra.mxu0 0.0
    %94 = vmatprep.subr.mxu0 0.0
    %95 = vmatpush2.msra.mxu0 0.0
    %96 = vmatprep.subr.mxu0 0.0
    %97 = vmatpush2.msra.mxu0 0.0
    %98 = vmatprep.subr.mxu0 0.0
    %99 = vmatpush2.msra.mxu0 0.0
    %100 = vmatprep.subr.mxu0 0.0
    %101 = vmatpush2.msra.mxu0 0.0
    %102 = vmatprep.subr.mxu0 0.0
    %103 = vmatpush2.msra.mxu0 0.0
    %104 = vmatprep.subr.mxu0 0.0
    %105 = vmatpush2.msra.mxu0 0.0
    %106 = vmatprep.subr.mxu0 0.0
    %107 = vmatpush2.msra.mxu0 0.0
    %108 = vmatprep.subr.mxu0 0.0
    %109 = vmatpush2.msra.mxu0 0.0
    %110 = vmatprep.mubr.f32.mxu0 0.0
    %111 = vmatmul.mubr.f32.gmra.mxu0 %v44
    %v112 = vpop.f32.mrf.mxu0
    %v113 = vadd.f32 %v40, %v112
    %v114 = vpop.f32.mrf.mxu0
    %115 = vdwg.mxu0
    %v116 = vmax.f32 %v113, 0.0
    %v117 = vld [vmem:[#allocation2] sm:$0x1]
    %v118 = vmin.f32 %v113, 0.0
    %v120 = vlaneseq
    %v121 = vshrl.u32 %v120, 7
    %v122 = vsub.s32 0, %v121
    %v123 = vrot.slane %v117, %v122
    %124 = vset.pattern.permute.xlu0 0
    %125 = vperm.xlu0 %124, %v123
    %v126 = vpop.permute.xlu0 %125
    %v128 = vmul.f32 %v126, %v118
    %v129 = vadd.f32 %v116, %v128
    %v130 = vld [vmem:[%s4] sm:$0xff]
    %v131 = vld [vmem:[%s4 + $0x8] sm:$0xff]
    %v132 = vld [vmem:[%s4 + $0x10] sm:$0xff]
    %v133 = vld [vmem:[%s4 + $0x18] sm:$0xff]
    %v134 = vld [vmem:[%s4 + $0x20] sm:$0xff]
    %v135 = vld [vmem:[%s4 + $0x28] sm:$0xff]
    %v136 = vld [vmem:[%s4 + $0x30] sm:$0xff]
    %v137 = vld [vmem:[%s4 + $0x38] sm:$0xff]
    %v138 = vld [vmem:[%s5] sm:$0x1]
    %v140 = vlaneseq
    %v141 = vshrl.u32 %v140, 7
    %v142 = vsub.s32 0, %v141
    %v143 = vrot.slane %v138, %v142
    %v146 = vsel %vm42, %v129, 0
    %148 = vmatprep.subr.mxu0 0.0
    %149 = vmatpush1.msra.mxu0 0.0
    %150 = vmatprep.subr.mxu0 0.0
    %151 = vmatpush1.msra.mxu0 0.0
    %152 = vmatprep.subr.mxu0 0.0
    %153 = vmatpush1.msra.mxu0 0.0
    %154 = vmatprep.subr.mxu0 0.0
    %155 = vmatpush1.msra.mxu0 0.0
    %156 = vmatprep.subr.mxu0 0.0
    %157 = vmatpush1.msra.mxu0 0.0
    %158 = vmatprep.subr.mxu0 0.0
    %159 = vmatpush1.msra.mxu0 0.0
    %160 = vmatprep.subr.mxu0 0.0
    %161 = vmatpush1.msra.mxu0 0.0
    %162 = vmatprep.subr.mxu0 0.0
    %163 = vmatpush1.msra.mxu0 0.0
    %164 = vmatprep.subr.mxu0 0.0
    %165 = vmatpush1.msra.mxu0 %v137
    %166 = vmatprep.subr.mxu0 0.0
    %167 = vmatpush1.msra.mxu0 %v136
    %168 = vmatprep.subr.mxu0 0.0
    %169 = vmatpush1.msra.mxu0 %v135
    %170 = vmatprep.subr.mxu0 0.0
    %171 = vmatpush1.msra.mxu0 %v134
    %172 = vmatprep.subr.mxu0 0.0
    %173 = vmatpush1.msra.mxu0 %v133
    %174 = vmatprep.subr.mxu0 0.0
    %175 = vmatpush1.msra.mxu0 %v132
    %176 = vmatprep.subr.mxu0 0.0
    %177 = vmatpush1.msra.mxu0 %v131
    %178 = vmatprep.subr.mxu0 0.0
    %179 = vmatpush1.msra.mxu0 %v130
    %180 = vmatprep.subr.mxu0 0.0
    %181 = vmatpush2.msra.mxu0 0.0
    %182 = vmatprep.subr.mxu0 0.0
    %183 = vmatpush2.msra.mxu0 0.0
    %184 = vmatprep.subr.mxu0 0.0
    %185 = vmatpush2.msra.mxu0 0.0
    %186 = vmatprep.subr.mxu0 0.0
    %187 = vmatpush2.msra.mxu0 0.0
    %188 = vmatprep.subr.mxu0 0.0
    %189 = vmatpush2.msra.mxu0 0.0
    %190 = vmatprep.subr.mxu0 0.0
    %191 = vmatpush2.msra.mxu0 0.0
    %192 = vmatprep.subr.mxu0 0.0
    %193 = vmatpush2.msra.mxu0 0.0
    %194 = vmatprep.subr.mxu0 0.0
    %195 = vmatpush2.msra.mxu0 0.0
    %196 = vmatprep.subr.mxu0 0.0
    %197 = vmatpush2.msra.mxu0 0.0
    %198 = vmatprep.subr.mxu0 0.0
    %199 = vmatpush2.msra.mxu0 0.0
    %200 = vmatprep.subr.mxu0 0.0
    %201 = vmatpush2.msra.mxu0 0.0
    %202 = vmatprep.subr.mxu0 0.0
    %203 = vmatpush2.msra.mxu0 0.0
    %204 = vmatprep.subr.mxu0 0.0
    %205 = vmatpush2.msra.mxu0 0.0
    %206 = vmatprep.subr.mxu0 0.0
    %207 = vmatpush2.msra.mxu0 0.0
    %208 = vmatprep.subr.mxu0 0.0
    %209 = vmatpush2.msra.mxu0 0.0
    %210 = vmatprep.subr.mxu0 0.0
    %211 = vmatpush2.msra.mxu0 0.0
    %212 = vmatprep.mubr.f32.mxu0 0.0
    %213 = vmatmul.mubr.f32.gmra.mxu0 %v146
    %v214 = vpop.f32.mrf.mxu0
    %v215 = vadd.f32 %v143, %v214
    %v216 = vpop.f32.mrf.mxu0
    %217 = vdwg.mxu0
    %vm218 = vcmask 123904
    %v219 = vsel %vm218, %v215, -inf
    %220 = vmax.xlane.f32.xlu0 %v219
    %v221 = vpop.xlane.xlu0 %220
    %v222 = vsub.f32 %v215, %v221
    %v223 = vmul.f32 %v222, 1.442695
    %v224 = vpow.pop %v223
    %v225 = vsel %vm218, %v224, 0.0
    %226 = vadd.xlane.f32.xlu0 %v225
    %v227 = vpop.xlane.xlu0 %226
    %v228 = vrcp.pop %v227
    %v229 = vmul.f32 %v224, %v228
    %230 = vst.msk [vmem:[#allocation3] sm:$0x3] %vm218, %v229
    // Predicated region
    $region26: #{tpu_custom_call.1} parent=1 // pred_check
      _
    $region27: #{tpu_custom_call.1} parent=1 // pred_check_branch
      %232 = sbr.rel (0) target = $region29
    $region28: #{tpu_custom_call.1} parent=1 // pred_region
      %s234 = ssub.s32 32, 32
      %235 = vsyncadd [#allocation4], %s234
      %s237 = sshll.u32 [#allocation3], 4
      %s238 = int_to_ptr.vmem [resolvable:$true] %s237
      %240 = dma.vmem_to_hbm [thread:$0]  %s238, 32, %s6, [#allocation4]
    $region29: #{tpu_custom_call.1} parent=1 // pred_fallthru
      _
    // Predicated region
    $region30: #{tpu_custom_call.1} parent=1 // pred_check
      _
    $region31: #{tpu_custom_call.1} parent=1 // pred_check_branch
      %242 = sbr.rel (0) target = $region33
    $region32: #{tpu_custom_call.1} parent=1 // pred_region
      %243 = dma.done [#allocation4], 32
    $region33: #{tpu_custom_call.1} parent=1 // pred_fallthru
      _
    %244 = vsyncpa [#allocation4], 1

</llo_original>
